<compile_context>
chip_gen: v7x
topology: tpu7x:2x2x1
jax: 0.10.0
libtpu: 0.0.40
codegen_flags: <defaults>
</compile_context>

<pallas_src>
import functools
import math

import jax
import jax.numpy as jnp
import numpy as np
from jax.experimental import pallas as pl
from jax.experimental.pallas import tpu as pltpu


def _round_up(x, m):
    return ((x + m - 1) // m) * m


def _tpu_vmem_capacity_bytes():
    try:
        cap = int(pltpu.get_tpu_info().vmem_capacity_bytes)
        if cap > 0:
            return cap
    except Exception:
        pass
    return 64 << 20  # conservative default (v7x physical VMEM per TensorCore)


def _choose_tile_n(n_tokens, d_model, itemsize, per_buffer_bytes, max_rows):
    """Rows of x per grid step."""
    # Small inputs: one exact block (no ragged reads, no padding, no waste).
    if n_tokens <= 512 and n_tokens * d_model * itemsize <= per_buffer_bytes:
        return n_tokens
    rows = per_buffer_bytes // max(1, d_model * itemsize)
    rows = int(min(rows, max_rows))
    # v7x megacore: keep >= 2 grid blocks on medium/large inputs so both
    # TensorCores (and their DMA queues) stream x.
    half = _round_up(pl.cdiv(n_tokens, 2), 128)
    rows = min(rows, half)
    rows = max(128, (rows // 128) * 128)            # lane/sublane friendly
    if rows >= n_tokens:
        return n_tokens                             # exact single block
    return rows


def _vmem_limit_bytes(tile_n, d_model, itemsize, vmem_cap):
    """Account for lane-padded (1, .) buffers; keep headroom under physical VMEM."""
    x_bufs = 2 * tile_n * d_model * itemsize                  # double-buffered x tiles
    out_bufs = 2 * 8 * _round_up(tile_n, 128) * 4             # (1, tile_n) f32, sublane-padded
    w_bufs = 2 * 8 * _round_up(d_model, 128) * itemsize       # (1, D) weight, sublane-padded
    need = x_bufs + out_bufs + w_bufs + (4 << 20)             # + compiler scratch headroom
    cap = (vmem_cap * 4) // 5                                 # ~52 MiB on v7x, ~102 MiB on v5e/v6e
    return int(min(max(need, 32 << 20), cap))


# ---------------------------------------------------------------------------
# Pallas kernel: router score = sigmoid(x @ w^T) per token, f32 accumulation.
# ---------------------------------------------------------------------------
def _router_score_kernel(x_ref, w_ref, s_ref):
    # x_ref: (TN, D) native dtype; w_ref: (1, D) same dtype; s_ref: (1, TN) f32.
    # NT dot_general -> lane-dense (1, TN) logits straight from the MXU.
    logits = jax.lax.dot_general(
        w_ref[...], x_ref[...],
        dimension_numbers=(((1,), (1,)), ((), ())),
        preferred_element_type=jnp.float32,
    )
    s_ref[...] = jax.nn.sigmoid(logits)


def _router_scores_impl(x_flat, w_row):
    N, D = x_flat.shape
    itemsize = jnp.dtype(x_flat.dtype).itemsize

    vmem_cap = _tpu_vmem_capacity_bytes()
    big_vmem = vmem_cap >= (100 << 20)                 # v5e / v6e (128 MiB parts)
    per_buffer = (24 << 20) if big_vmem else (14 << 20)
    max_rows = 4096 if big_vmem else 2048

    tile_n = _choose_tile_n(N, D, itemsize, per_buffer, max_rows)
    num_blocks = pl.cdiv(N, tile_n)

    out = pl.pallas_call(
        _router_score_kernel,
        out_shape=jax.ShapeDtypeStruct((num_blocks, tile_n), jnp.float32),
        grid_spec=pltpu.PrefetchScalarGridSpec(
            num_scalar_prefetch=0,
            grid=(num_blocks,),
            in_specs=[
                pl.BlockSpec((tile_n, D), lambda i: (i, 0)),   # token tile of x
                pl.BlockSpec((1, D), lambda i: (0, 0)),        # lane-dense router weight
            ],
            out_specs=pl.BlockSpec((1, tile_n), lambda i: (i, 0)),  # lane-dense scores
        ),
        compiler_params=pltpu.CompilerParams(
            dimension_semantics=("parallel",),   # distinct output block per step
            vmem_limit_bytes=_vmem_limit_bytes(tile_n, D, itemsize, vmem_cap),
        ),
    )(x_flat, w_row)
    # Ragged last block only produces garbage beyond N; slice it off.
    return out.reshape(num_blocks * tile_n)[:N]


# custom_vjp so the aux-loss training signal reaches router_w / x.
@jax.custom_vjp
def router_scores(x_flat, w_row):
    """sigmoid(x_flat @ w_row^T) per token.  x_flat: (N, D); w_row: (1, D) -> (N,) f32."""
    return _router_scores_impl(x_flat, w_row)


def _router_scores_fwd(x_flat, w_row):
    s = _router_scores_impl(x_flat, w_row)
    return s, (x_flat, w_row, s)


def _router_scores_bwd(res, g):
    x_flat, w_row, s = res
    dlogit = g.astype(jnp.float32) * s * (1.0 - s)                               # (N,)
    dx = (dlogit[:, None] * w_row.astype(jnp.float32)).astype(x_flat.dtype)      # (N, D)
    dw = jnp.dot(dlogit[None, :], x_flat.astype(jnp.float32)).astype(w_row.dtype)  # (1, D)
    return dx, dw


router_scores.defvjp(_router_scores_fwd, _router_scores_bwd)


# ---------------------------------------------------------------------------
# Full forward (matches ExpertChoiceRouter.forward with router_arch='linear').
# Fully jittable: no host sync, data-dependent k resolved on device.
# ---------------------------------------------------------------------------
def expert_choice_router_forward(
    x, current_mask, router_w, *, capacity_factor=0.67, aux_loss_coef=0.001
):
    """x: (B, S, D); current_mask: (B, S) bool; router_w: (1, D)."""
    B, S, D = x.shape
    N = B * S

    x_flat = x.reshape(N, D)                         # native dtype, no up-cast
    w_row = router_w.reshape(1, D).astype(x.dtype)   # lane-dense (1, D)

    scores = router_scores(x_flat, w_row)            # (N,) f32

    mask_flat = current_mask.reshape(N)
    n_active = jnp.sum(mask_flat.astype(jnp.int32))
    # k = max(1, int(n_active * capacity_factor)) computed on device.
    num_to_keep = jnp.maximum(
        1, jnp.floor(n_active.astype(jnp.float32) * capacity_factor).astype(jnp.int32)
    )

    # sigmoid >= 0 > -1, so inactive tokens can never be selected.
    masked = jnp.where(mask_flat, scores, jnp.float32(-1.0))

    # Full descending sort (static shape); dynamic rank threshold picks the top k.
    sorted_scores, sorted_idx = jax.lax.top_k(masked, N)
    ranks = jnp.arange(N, dtype=jnp.int32)
    keep_sorted = ranks < num_to_keep
    new_mask_flat = jnp.zeros((N,), dtype=jnp.bool_).at[sorted_idx].set(keep_sorted)

    # Degenerate cases keep the current mask and zero loss (PyTorch early returns).
    passthrough = jnp.logical_or(n_active == 0, num_to_keep >= n_active)
    new_mask_flat = jnp.where(passthrough, mask_flat, new_mask_flat)
    new_mask = new_mask_flat.reshape(B, S)

    top_sum = jnp.sum(jnp.where(keep_sorted, sorted_scores, jnp.float32(0.0)))
    aux_loss = -(top_sum / num_to_keep.astype(jnp.float32)) * jnp.float32(aux_loss_coef)
    aux_loss = jnp.where(passthrough, jnp.float32(0.0), aux_loss)
    return new_mask, aux_loss


if __name__ == "__main__":
    B, S, D = 2, 8, 32
    key = jax.random.PRNGKey(0)
    kx, kw, km, kx2, kw2 = jax.random.split(key, 5)

    # Model activations in bf16 (native streaming dtype for the kernel).
    x = jax.random.normal(kx, (B, S, D), dtype=jnp.float32).astype(jnp.bfloat16)

    # nn.Linear(d_model, 1, bias=False)-style init: U(-1/sqrt(D), 1/sqrt(D)).
    bound = 1.0 / math.sqrt(D)
    router_w = jax.random.uniform(
        kw, (1, D), dtype=jnp.float32, minval=-bound, maxval=bound
    )

    # A mask with most (but not all) tokens active.
    current_mask = jax.random.bernoulli(km, p=0.8, shape=(B, S))

    fwd = jax.jit(
        functools.partial(
            expert_choice_router_forward, capacity_factor=0.67, aux_loss_coef=0.001
        )
    )
    new_mask, aux_loss = fwd(x, current_mask, router_w)
    new_mask = jax.block_until_ready(new_mask)
    aux_loss = jax.block_until_ready(aux_loss)

    # Sanity 1: kernel scores match a pure-JAX f32 reference on the same inputs.
    x_flat = x.reshape(B * S, D)
    w_row = router_w.reshape(1, D).astype(x.dtype)
    ker = jax.block_until_ready(router_scores(x_flat, w_row))
    ref = jax.nn.sigmoid(
        jnp.dot(x_flat.astype(jnp.float32), w_row.astype(jnp.float32).T)
    )[:, 0]
    assert np.allclose(np.asarray(ker), np.asarray(ref), atol=2e-3)

    # Sanity 2: multi-block grid with a ragged (clipped) last block.
    N2, D2 = 640, 64
    x2 = jax.random.normal(kx2, (N2, D2), dtype=jnp.float32).astype(jnp.bfloat16)
    w2 = jax.random.uniform(kw2, (1, D2), jnp.float32, -0.1, 0.1).astype(jnp.bfloat16)
    s2 = jax.block_until_ready(router_scores(x2, w2))
    r2 = jax.nn.sigmoid(
        jnp.dot(x2.astype(jnp.float32), w2.astype(jnp.float32).T)
    )[:, 0]
    assert s2.shape == (N2,)
    assert np.allclose(np.asarray(s2), np.asarray(r2), atol=2e-3)

    # Sanity 3: routing semantics match the PyTorch module.
    mask_np = np.asarray(current_mask)
    n_active = int(mask_np.sum())
    expected_keep = max(1, int(n_active * 0.67)) if n_active > 0 else 0
    nm = np.asarray(new_mask)
    if n_active == 0 or expected_keep >= n_active:
        assert bool(np.all(nm == mask_np))
    else:
        assert int(nm.sum()) == expected_keep
        assert bool(np.all(nm <= mask_np))
    assert np.isfinite(float(aux_loss))

    # Sanity 4: gradients flow through the Pallas call via custom_vjp.
    def loss_fn(w):
        _, al = expert_choice_router_forward(
            x, current_mask, w, capacity_factor=0.67, aux_loss_coef=0.001
        )
        return al

    gw = jax.block_until_ready(jax.grad(loss_fn)(router_w))
    assert gw.shape == router_w.shape
    assert np.all(np.isfinite(np.asarray(gw)))

    print("KERNEL_OK")
</pallas_src>

<mosaic_0001>
module attributes {stable_mosaic.version = 11 : i64} {
  func.func @_router_score_kernel(%arg0: i32, %arg1: memref<16x32xbf16, #tpu.memory_space<vmem>>, %arg2: memref<1x32xbf16, #tpu.memory_space<vmem>>, %arg3: memref<1x16xf32, #tpu.memory_space<vmem>>) attributes {dimension_semantics = [#tpu.dimension_semantics<parallel>], iteration_bounds = array<i64: 1>, scalar_prefetch = 0 : i64, scratch_operands = 0 : i64, tpu.core_type = #tpu.core_type<tc>, window_params = [{transform_indices = @transform_0, window_bounds = array<i64: 16, 32>}, {pipeline_mode = #tpu.pipeline_mode<synchronous>, transform_indices = @transform_1, window_bounds = array<i64: 1, 32>}, {transform_indices = @transform_2, window_bounds = array<i64: 1, 16>}]} {
    %c0 = arith.constant 0 : index
    %c0_0 = arith.constant 0 : index
    %0 = vector.load %arg2[%c0, %c0_0] : memref<1x32xbf16, #tpu.memory_space<vmem>>, vector<1x32xbf16>
    %c0_1 = arith.constant 0 : index
    %c0_2 = arith.constant 0 : index
    %1 = vector.load %arg1[%c0_1, %c0_2] : memref<16x32xbf16, #tpu.memory_space<vmem>>, vector<16x32xbf16>
    %cst = arith.constant dense<0.000000e+00> : vector<1x16xf32>
    %2 = tpu.matmul %0, %1, %cst {dimension_numbers = #tpu.dot_dimension_numbers<[1], [1], [0], [0], [0, 0, 1, 0], [], []>} : vector<1x32xbf16>, vector<16x32xbf16>, vector<1x16xf32> -> vector<1x16xf32>
    %3 = arith.negf %2 : vector<1x16xf32>
    %4 = math.exp %3 : vector<1x16xf32>
    %cst_3 = arith.constant 1.000000e+00 : f32
    %5 = vector.broadcast %cst_3 : f32 to vector<1x16xf32>
    %6 = arith.addf %5, %4 : vector<1x16xf32>
    %7 = arith.divf %5, %6 : vector<1x16xf32>
    %c0_4 = arith.constant 0 : index
    %c0_5 = arith.constant 0 : index
    %8 = vector.load %arg3[%c0_4, %c0_5] : memref<1x16xf32, #tpu.memory_space<vmem>>, vector<1x16xf32>
    tpu.vector_store %arg3[%c0_4, %c0_5], %7 {strides = array<i32>} : memref<1x16xf32, #tpu.memory_space<vmem>>, vector<1x16xf32>,
    return
  }
  func.func @transform_0(%arg0: i32) -> (i32, i32) {
    %c0_i32 = arith.constant 0 : i32
    %c0_i32_0 = arith.constant 0 : i32
    return %arg0, %c0_i32 : i32, i32
  }
  func.func @transform_1(%arg0: i32) -> (i32, i32) {
    %c0_i32 = arith.constant 0 : i32
    %c0_i32_0 = arith.constant 0 : i32
    %c0_i32_1 = arith.constant 0 : i32
    return %c0_i32, %c0_i32_0 : i32, i32
  }
  func.func @transform_2(%arg0: i32) -> (i32, i32) {
    %c0_i32 = arith.constant 0 : i32
    %c0_i32_0 = arith.constant 0 : i32
    return %arg0, %c0_i32 : i32, i32
  }
}

</mosaic_0001>

<llo_original>
// kernel: expert_choice_router_forward.1
$region0: #{expert_choice_router_forward.1}
  #allocation0 [shape = 'u32[]', space=smem, size = 0x4, offset = 0x4, fixed_abs, tag = 'smem constant byte address 0x4 - core index']
  #allocation1 [shape = 'u32[144,128]{1,0:T(1,128)}', space=vmem, size = 0x12000, scoped, tag = 'internal scratch']
  %s0 = inlined_call_operand.vmem [shape: bf16[16,32], index: 0, kind: input, shape index: {}]
  %s1 = inlined_call_operand.vmem [shape: bf16[1,32], index: 1, kind: input, shape index: {}]
  %s2 = inlined_call_operand.vmem [shape: f32[1,16], index: 2, kind: output, shape index: {}]
  %s3 = sld [smem:[#allocation0]]
  $region18: #{expert_choice_router_forward.1} parent=0
    _
  %s5 = ssub.s32 1, %s3
  %s6 = scalar_select 0, %s5, %s3
  // Predicated region
  $region2: #{expert_choice_router_forward.1} parent=0 // pred_check
    _
  $region3: #{expert_choice_router_forward.1} parent=0 // pred_check_branch
    %8 = sbr.rel (0) target = $region5
  $region4: #{expert_choice_router_forward.1} parent=0 // pred_region
    _
  $region5: #{expert_choice_router_forward.1} parent=0 // pred_fallthru
    _
  // Predicated region
  $region6: #{expert_choice_router_forward.1} parent=0 // pred_check
    _
  $region7: #{expert_choice_router_forward.1} parent=0 // pred_check_branch
    %10 = sbr.rel (0) target = $region9
  $region8: #{expert_choice_router_forward.1} parent=0 // pred_region
    _
  $region9: #{expert_choice_router_forward.1} parent=0 // pred_fallthru
    _
  %v12 = vld [vmem:[%s1] sm:$0x1]
  %v13 = vld [vmem:[%s0] sm:$0xf]
  %v14 = vld [vmem:[%s0 + $0x4] sm:$0xf]
  %v17 = vunpack.c.l.b16 %v13
  %v18 = vunpack.c.l.b16 %v14
  %v19 = vpack.c.b16 %v18, %v17
  %vm20 = vcmask 261120
  %v22 = vsel %vm20, %v12, 0
  %v25 = vsel %vm20, %v19, 0
  %27 = vmatprep.subr.bf16.mxu0 0
  %28 = vmatpush1.bf16.xpose.msra.mxu0 %v25
  %29 = vmatprep.subr.bf16.mxu0 0
  %30 = vmatpush1.bf16.xpose.msra.mxu0 0
  %31 = vmatprep.subr.bf16.mxu0 0
  %32 = vmatpush1.bf16.xpose.msra.mxu0 0
  %33 = vmatprep.subr.bf16.mxu0 0
  %34 = vmatpush1.bf16.xpose.msra.mxu0 0
  %35 = vmatprep.subr.bf16.mxu0 0
  %36 = vmatpush1.bf16.xpose.msra.mxu0 0
  %37 = vmatprep.subr.bf16.mxu0 0
  %38 = vmatpush1.bf16.xpose.msra.mxu0 0
  %39 = vmatprep.subr.bf16.mxu0 0
  %40 = vmatpush1.bf16.xpose.msra.mxu0 0
  %41 = vmatprep.subr.bf16.mxu0 0
  %42 = vmatpush1.bf16.xpose.msra.mxu0 0
  %43 = vmatprep.subr.bf16.mxu0 0
  %44 = vmatpush1.bf16.xpose.msra.mxu0 0
  %45 = vmatprep.subr.bf16.mxu0 0
  %46 = vmatpush1.bf16.xpose.msra.mxu0 0
  %47 = vmatprep.subr.bf16.mxu0 0
  %48 = vmatpush1.bf16.xpose.msra.mxu0 0
  %49 = vmatprep.subr.bf16.mxu0 0
  %50 = vmatpush1.bf16.xpose.msra.mxu0 0
  %51 = vmatprep.subr.bf16.mxu0 0
  %52 = vmatpush1.bf16.xpose.msra.mxu0 0
  %53 = vmatprep.subr.bf16.mxu0 0
  %54 = vmatpush1.bf16.xpose.msra.mxu0 0
  %55 = vmatprep.subr.bf16.mxu0 0
  %56 = vmatpush1.bf16.xpose.msra.mxu0 0
  %57 = vmatprep.subr.bf16.mxu0 0
  %58 = vmatpush1.bf16.xpose.msra.mxu0 0
  %59 = vmatprep.mubr.bf16.mxu0 0
  %60 = vmatmul.mubr.bf16.gmra.mrb[0].mxu0 %v22
  %v61 = vpop.f32.mrb[0].mxu0
  %v62 = vadd.f32 0.0, %v61
  %v63 = vpop.f32.mrb[0].mxu0
  %v64 = vpop.f32.mrb[0].mxu0
  %v65 = vpop.f32.mrb[0].mxu0
  %66 = vdwg.mxu0
  %v67 = vxor.u32 %v62, 2147483648
  %v68 = vmul.f32 %v67, 1.442695
  %v69 = vpow.pop %v68
  %v70 = vadd.f32 %v69, 1.0
  %v71 = vrcp.pop %v70
  %v72 = vmul.f32 1.0, %v71
  %vm73 = vcmask 122880
  %74 = vst.msk [vmem:[%s2] sm:$0x1] %vm73, %v72
  // Predicated region
  $region10: #{expert_choice_router_forward.1} parent=0 // pred_check
    _
  $region11: #{expert_choice_router_forward.1} parent=0 // pred_check_branch
    %76 = sbr.rel (0) target = $region13
  $region12: #{expert_choice_router_forward.1} parent=0 // pred_region
    _
  $region13: #{expert_choice_router_forward.1} parent=0 // pred_fallthru
    _
  // Predicated region
  $region14: #{expert_choice_router_forward.1} parent=0 // pred_check
    _
  $region15: #{expert_choice_router_forward.1} parent=0 // pred_check_branch
    %78 = sbr.rel (0) target = $region17
  $region16: #{expert_choice_router_forward.1} parent=0 // pred_region
    _
  $region17: #{expert_choice_router_forward.1} parent=0 // pred_fallthru
    _

</llo_original>
